<compile_context>
chip_gen: v7x
topology: tpu7x:2x2x1
jax: 0.10.0
libtpu: 0.0.40
codegen_flags: <defaults>
</compile_context>

<pallas_src>
import functools

import jax
import jax.numpy as jnp
from jax.experimental import pallas as pl
from jax.experimental.pallas import tpu as pltpu

LANE = 128      # vreg lane width (last dim)
SUBLANE = 8     # f32 sublane granularity (second-to-last dim)


def _round_up(x, m):
    return ((x + m - 1) // m) * m


def _fused_autoencoder_kernel(x_ref, w_ref, b_ref, enc_ref, dec_ref,
                              *, n_enc, n_layers):
    """One batch tile through every layer: h <- tanh(h @ W_l + b_l).

    x_ref:   (tile_m, P)        padded input activations
    w_ref:   (n_layers, P, P)   padded, stacked weights (VMEM-resident)
    b_ref:   (n_layers, 1, P)   padded, stacked biases
    enc_ref: (tile_m, P)        padded encoder output (written once)
    dec_ref: (tile_m, P)        padded decoder output
    """
    h = x_ref[...].astype(jnp.float32)
    for l in range(n_layers):               # static unroll over layers
        acc = jnp.dot(h, w_ref[l], preferred_element_type=jnp.float32)
        acc = acc + b_ref[l]                 # (1, P) bias broadcast
        h = jnp.tanh(acc)                    # EUP transcendental, f32
        if l == n_enc - 1:                   # end of encoder stack
            enc_ref[...] = h.astype(enc_ref.dtype)
    dec_ref[...] = h.astype(dec_ref.dtype)


def autoencoder_forward_fused(x, enc_params, dec_params, *, tile_m=None):
    """Reproduces ClassicAutoencoder.forward: returns (encoded, decoded)."""
    M, K = x.shape
    layers = list(enc_params) + list(dec_params)
    n_enc = len(enc_params)
    n_layers = len(layers)

    # Pad every feature dim up to the same lane-dense width P.
    feat_dims = [K] + [w.shape[1] for (w, _) in layers]
    P = _round_up(max(max(feat_dims), LANE), LANE)

    # Batch tile: multiple of the f32 sublane (8), capped so VMEM stays small
    # even with double-buffered input/output tiles (works on v7x's 64 MiB too).
    if tile_m is None:
        tile_m = min(256, _round_up(M, SUBLANE))
    M_pad = _round_up(M, tile_m)

    dt = x.dtype

    # Zero-pad input rows/lanes (exact: zeros propagate as zeros, see header).
    x_pad = jnp.zeros((M_pad, P), dt).at[:M, :K].set(x)

    # Stack + zero-pad all weights/biases (tiny; stays VMEM-resident).
    w_stack = jnp.zeros((n_layers, P, P), jnp.float32)
    b_stack = jnp.zeros((n_layers, 1, P), jnp.float32)
    for l, (w, b) in enumerate(layers):
        fin, fout = w.shape
        w_stack = w_stack.at[l, :fin, :fout].set(w.astype(jnp.float32))
        b_stack = b_stack.at[l, 0, :fout].set(b.astype(jnp.float32))

    kernel = functools.partial(
        _fused_autoencoder_kernel, n_enc=n_enc, n_layers=n_layers)

    enc_pad, dec_pad = pl.pallas_call(
        kernel,
        out_shape=(
            jax.ShapeDtypeStruct((M_pad, P), dt),
            jax.ShapeDtypeStruct((M_pad, P), dt),
        ),
        grid_spec=pl.GridSpec(
            grid=(M_pad // tile_m,),
            in_specs=[
                # Batch tile of activations.
                pl.BlockSpec((tile_m, P), lambda i: (i, 0)),
                # Grid-invariant weight / bias stacks (full blocks, VMEM).
                pl.BlockSpec((n_layers, P, P), lambda i: (0, 0, 0)),
                pl.BlockSpec((n_layers, 1, P), lambda i: (0, 0, 0)),
            ],
            out_specs=(
                pl.BlockSpec((tile_m, P), lambda i: (i, 0)),
                pl.BlockSpec((tile_m, P), lambda i: (i, 0)),
            ),
        ),
        compiler_params=pltpu.CompilerParams(
            # Batch axis is embarrassingly parallel -> megacore on v7x.
            dimension_semantics=("parallel",),
        ),
    )(x_pad, w_stack, b_stack)

    enc_dim = layers[n_enc - 1][0].shape[1]
    dec_dim = layers[-1][0].shape[1]
    return enc_pad[:M, :enc_dim], dec_pad[:M, :dec_dim]


def init_autoencoder_params(key, input_size, hidden_sizes, dtype=jnp.float32):
    """Synthetic params with the same shapes as the PyTorch module.

    Returns (encoder_params, decoder_params): lists of (W, b) with
    W shape (in_features, out_features), b shape (out_features,).
    """
    enc_dims, dec_dims = [], []
    prev = input_size
    for h in hidden_sizes:
        enc_dims.append((prev, h))
        prev = h
    for i in range(len(hidden_sizes) - 1, -1, -1):
        out = input_size if i == 0 else hidden_sizes[i - 1]
        dec_dims.append((hidden_sizes[i], out))

    def make(dims, key):
        params = []
        for (fin, fout) in dims:
            key, kw, kb = jax.random.split(key, 3)
            bound = 1.0 / (fin ** 0.5)  # matches nn.Linear default init range
            W = jax.random.uniform(kw, (fin, fout), dtype, -bound, bound)
            b = jax.random.uniform(kb, (fout,), dtype, -bound, bound)
            params.append((W, b))
        return params, key

    enc_params, key = make(enc_dims, key)
    dec_params, _ = make(dec_dims, key)
    return enc_params, dec_params


@jax.jit
def autoencoder_forward(x, enc_params, dec_params):
    return autoencoder_forward_fused(x, enc_params, dec_params)


if __name__ == "__main__":
    key = jax.random.PRNGKey(0)
    batch = 8
    input_size = 64
    hidden_sizes = [32, 16]

    key, kx, kp = jax.random.split(key, 3)
    x = jax.random.normal(kx, (batch, input_size), dtype=jnp.float32)
    enc_params, dec_params = init_autoencoder_params(kp, input_size, hidden_sizes)

    encoded, decoded = autoencoder_forward(x, enc_params, dec_params)
    jax.block_until_ready((encoded, decoded))

    # Correctness check against a pure-JAX reference.
    h = x
    for (W, b) in enc_params:
        h = jnp.tanh(h @ W + b)
    ref_enc = h
    for (W, b) in dec_params:
        h = jnp.tanh(h @ W + b)
    ref_dec = h

    assert encoded.shape == (batch, hidden_sizes[-1])
    assert decoded.shape == (batch, input_size)
    assert jnp.allclose(encoded, ref_enc, atol=1e-5), "encoded mismatch"
    assert jnp.allclose(decoded, ref_dec, atol=1e-5), "decoded mismatch"

    print("KERNEL_OK")
</pallas_src>

<mosaic_0001>
module attributes {stable_mosaic.version = 11 : i64} {
  func.func @_fused_autoencoder_kernel(%arg0: i32, %arg1: memref<8x128xf32, #tpu.memory_space<vmem>>, %arg2: memref<4x128x128xf32, #tpu.memory_space<vmem>>, %arg3: memref<4x1x128xf32, #tpu.memory_space<vmem>>, %arg4: memref<8x128xf32, #tpu.memory_space<vmem>>, %arg5: memref<8x128xf32, #tpu.memory_space<vmem>>) attributes {dimension_semantics = [#tpu.dimension_semantics<parallel>], iteration_bounds = array<i64: 1>, scalar_prefetch = 0 : i64, scratch_operands = 0 : i64, tpu.core_type = #tpu.core_type<tc>, window_params = [{transform_indices = @transform_0, window_bounds = array<i64: 8, 128>}, {pipeline_mode = #tpu.pipeline_mode<synchronous>, transform_indices = @transform_1, window_bounds = array<i64: 4, 128, 128>}, {pipeline_mode = #tpu.pipeline_mode<synchronous>, transform_indices = @transform_2, window_bounds = array<i64: 4, 1, 128>}, {transform_indices = @transform_3, window_bounds = array<i64: 8, 128>}, {transform_indices = @transform_4, window_bounds = array<i64: 8, 128>}]} {
    %c0 = arith.constant 0 : index
    %c0_0 = arith.constant 0 : index
    %0 = vector.load %arg1[%c0, %c0_0] : memref<8x128xf32, #tpu.memory_space<vmem>>, vector<8x128xf32>
    %c0_1 = arith.constant 0 : index
    %c0_2 = arith.constant 0 : index
    %c0_3 = arith.constant 0 : index
    %1 = vector.load %arg2[%c0_1, %c0_2, %c0_3] : memref<4x128x128xf32, #tpu.memory_space<vmem>>, vector<1x128x128xf32>
    %2 = vector.shape_cast %1 : vector<1x128x128xf32> to vector<128x128xf32>
    %cst = arith.constant dense<0.000000e+00> : vector<8x128xf32>
    %3 = tpu.matmul %0, %2, %cst {dimension_numbers = #tpu.dot_dimension_numbers<[1], [0], [0], [1], [0, 0, 1, 1], [], []>} : vector<8x128xf32>, vector<128x128xf32>, vector<8x128xf32> -> vector<8x128xf32>
    %c0_4 = arith.constant 0 : index
    %c0_5 = arith.constant 0 : index
    %c0_6 = arith.constant 0 : index
    %4 = vector.load %arg3[%c0_4, %c0_5, %c0_6] : memref<4x1x128xf32, #tpu.memory_space<vmem>>, vector<1x1x128xf32>
    %5 = vector.shape_cast %4 : vector<1x1x128xf32> to vector<1x128xf32>
    %6 = vector.broadcast %5 : vector<1x128xf32> to vector<8x128xf32>
    %7 = arith.addf %3, %6 : vector<8x128xf32>
    %8 = math.tanh %7 : vector<8x128xf32>
    %c1 = arith.constant 1 : index
    %c0_7 = arith.constant 0 : index
    %c0_8 = arith.constant 0 : index
    %9 = vector.load %arg2[%c1, %c0_7, %c0_8] : memref<4x128x128xf32, #tpu.memory_space<vmem>>, vector<1x128x128xf32>
    %10 = vector.shape_cast %9 : vector<1x128x128xf32> to vector<128x128xf32>
    %cst_9 = arith.constant dense<0.000000e+00> : vector<8x128xf32>
    %11 = tpu.matmul %8, %10, %cst_9 {dimension_numbers = #tpu.dot_dimension_numbers<[1], [0], [0], [1], [0, 0, 1, 1], [], []>} : vector<8x128xf32>, vector<128x128xf32>, vector<8x128xf32> -> vector<8x128xf32>
    %c1_10 = arith.constant 1 : index
    %c0_11 = arith.constant 0 : index
    %c0_12 = arith.constant 0 : index
    %12 = vector.load %arg3[%c1_10, %c0_11, %c0_12] : memref<4x1x128xf32, #tpu.memory_space<vmem>>, vector<1x1x128xf32>
    %13 = vector.shape_cast %12 : vector<1x1x128xf32> to vector<1x128xf32>
    %14 = vector.broadcast %13 : vector<1x128xf32> to vector<8x128xf32>
    %15 = arith.addf %11, %14 : vector<8x128xf32>
    %16 = math.tanh %15 : vector<8x128xf32>
    %c0_13 = arith.constant 0 : index
    %c0_14 = arith.constant 0 : index
    %17 = vector.load %arg4[%c0_13, %c0_14] : memref<8x128xf32, #tpu.memory_space<vmem>>, vector<8x128xf32>
    tpu.vector_store %arg4[%c0_13, %c0_14], %16 {strides = array<i32>} : memref<8x128xf32, #tpu.memory_space<vmem>>, vector<8x128xf32>,
    %c2 = arith.constant 2 : index
    %c0_15 = arith.constant 0 : index
    %c0_16 = arith.constant 0 : index
    %18 = vector.load %arg2[%c2, %c0_15, %c0_16] : memref<4x128x128xf32, #tpu.memory_space<vmem>>, vector<1x128x128xf32>
    %19 = vector.shape_cast %18 : vector<1x128x128xf32> to vector<128x128xf32>
    %cst_17 = arith.constant dense<0.000000e+00> : vector<8x128xf32>
    %20 = tpu.matmul %16, %19, %cst_17 {dimension_numbers = #tpu.dot_dimension_numbers<[1], [0], [0], [1], [0, 0, 1, 1], [], []>} : vector<8x128xf32>, vector<128x128xf32>, vector<8x128xf32> -> vector<8x128xf32>
    %c2_18 = arith.constant 2 : index
    %c0_19 = arith.constant 0 : index
    %c0_20 = arith.constant 0 : index
    %21 = vector.load %arg3[%c2_18, %c0_19, %c0_20] : memref<4x1x128xf32, #tpu.memory_space<vmem>>, vector<1x1x128xf32>
    %22 = vector.shape_cast %21 : vector<1x1x128xf32> to vector<1x128xf32>
    %23 = vector.broadcast %22 : vector<1x128xf32> to vector<8x128xf32>
    %24 = arith.addf %20, %23 : vector<8x128xf32>
    %25 = math.tanh %24 : vector<8x128xf32>
    %c3 = arith.constant 3 : index
    %c0_21 = arith.constant 0 : index
    %c0_22 = arith.constant 0 : index
    %26 = vector.load %arg2[%c3, %c0_21, %c0_22] : memref<4x128x128xf32, #tpu.memory_space<vmem>>, vector<1x128x128xf32>
    %27 = vector.shape_cast %26 : vector<1x128x128xf32> to vector<128x128xf32>
    %cst_23 = arith.constant dense<0.000000e+00> : vector<8x128xf32>
    %28 = tpu.matmul %25, %27, %cst_23 {dimension_numbers = #tpu.dot_dimension_numbers<[1], [0], [0], [1], [0, 0, 1, 1], [], []>} : vector<8x128xf32>, vector<128x128xf32>, vector<8x128xf32> -> vector<8x128xf32>
    %c3_24 = arith.constant 3 : index
    %c0_25 = arith.constant 0 : index
    %c0_26 = arith.constant 0 : index
    %29 = vector.load %arg3[%c3_24, %c0_25, %c0_26] : memref<4x1x128xf32, #tpu.memory_space<vmem>>, vector<1x1x128xf32>
    %30 = vector.shape_cast %29 : vector<1x1x128xf32> to vector<1x128xf32>
    %31 = vector.broadcast %30 : vector<1x128xf32> to vector<8x128xf32>
    %32 = arith.addf %28, %31 : vector<8x128xf32>
    %33 = math.tanh %32 : vector<8x128xf32>
    %c0_27 = arith.constant 0 : index
    %c0_28 = arith.constant 0 : index
    %34 = vector.load %arg5[%c0_27, %c0_28] : memref<8x128xf32, #tpu.memory_space<vmem>>, vector<8x128xf32>
    tpu.vector_store %arg5[%c0_27, %c0_28], %33 {strides = array<i32>} : memref<8x128xf32, #tpu.memory_space<vmem>>, vector<8x128xf32>,
    return
  }
  func.func @transform_0(%arg0: i32) -> (i32, i32) {
    %c0_i32 = arith.constant 0 : i32
    %c0_i32_0 = arith.constant 0 : i32
    return %arg0, %c0_i32 : i32, i32
  }
  func.func @transform_1(%arg0: i32) -> (i32, i32, i32) {
    %c0_i32 = arith.constant 0 : i32
    %c0_i32_0 = arith.constant 0 : i32
    %c0_i32_1 = arith.constant 0 : i32
    %c0_i32_2 = arith.constant 0 : i32
    return %c0_i32, %c0_i32_0, %c0_i32_1 : i32, i32, i32
  }
  func.func @transform_2(%arg0: i32) -> (i32, i32, i32) {
    %c0_i32 = arith.constant 0 : i32
    %c0_i32_0 = arith.constant 0 : i32
    %c0_i32_1 = arith.constant 0 : i32
    %c0_i32_2 = arith.constant 0 : i32
    return %c0_i32, %c0_i32_0, %c0_i32_1 : i32, i32, i32
  }
  func.func @transform_3(%arg0: i32) -> (i32, i32) {
    %c0_i32 = arith.constant 0 : i32
    %c0_i32_0 = arith.constant 0 : i32
    return %arg0, %c0_i32 : i32, i32
  }
  func.func @transform_4(%arg0: i32) -> (i32, i32) {
    %c0_i32 = arith.constant 0 : i32
    %c0_i32_0 = arith.constant 0 : i32
    return %arg0, %c0_i32 : i32, i32
  }
}

</mosaic_0001>

<llo_original>
// kernel: autoencoder_forward.1
$region0: #{autoencoder_forward.1}
  #allocation0 [shape = 'u32[]', space=smem, size = 0x4, offset = 0x4, fixed_abs, tag = 'smem constant byte address 0x4 - core index']
  #allocation1 [shape = 'u32[144,128]{1,0:T(1,128)}', space=vmem, size = 0x12000, scoped, tag = 'internal scratch']
  %s0 = inlined_call_operand.vmem [shape: f32[8,128], index: 0, kind: input, shape index: {}]
  %s1 = inlined_call_operand.vmem [shape: f32[4,128,128], index: 1, kind: input, shape index: {}]
  %s2 = inlined_call_operand.vmem [shape: f32[4,1,128], index: 2, kind: input, shape index: {}]
  %s3 = inlined_call_operand.hbm [shape: f32[8,128], index: 3, kind: output, shape index: {0}]
  %s4 = inlined_call_operand.hbm [shape: f32[8,128], index: 4, kind: output, shape index: {1}]
  %5 = xla_tuple %s3, %s4
  %s6 = sld [smem:[#allocation0]]
  $region30: #{autoencoder_forward.1} parent=0
    _
  %s8 = ssub.s32 1, %s6
  %s9 = scalar_select 0, %s8, %s6
  $region1: #{autoencoder_forward.1} parent=0
    #allocation2 [shape = 'u8[4096]{0}', space=vmem, size = 0x1000, scoped, tag = 'output window, operand 0, single buffered']
    #allocation3 [shape = 's32[1]{0}', space=sflag, size = 0x4, scoped, tag = 'scoped memory for autoencoder_forward.1']
    #allocation4 [shape = 'u8[4096]{0}', space=vmem, size = 0x1000, scoped, tag = 'output window, operand 1, single buffered']
    #allocation5 [shape = 's32[1]{0}', space=sflag, size = 0x4, scoped, tag = 'scoped memory for autoencoder_forward.1']
    %10 = vsyncpa [#allocation3], 0
    %11 = vsyncpa [#allocation5], 0
    // Predicated region
    $region2: #{autoencoder_forward.1} parent=1 // pred_check
      _
    $region3: #{autoencoder_forward.1} parent=1 // pred_check_branch
      %13 = sbr.rel (0) target = $region5
    $region4: #{autoencoder_forward.1} parent=1 // pred_region
      _
    $region5: #{autoencoder_forward.1} parent=1 // pred_fallthru
      _
    // Predicated region
    $region6: #{autoencoder_forward.1} parent=1 // pred_check
      _
    $region7: #{autoencoder_forward.1} parent=1 // pred_check_branch
      %15 = sbr.rel (0) target = $region9
    $region8: #{autoencoder_forward.1} parent=1 // pred_region
      _
    $region9: #{autoencoder_forward.1} parent=1 // pred_fallthru
      _
    // Predicated region
    $region10: #{autoencoder_forward.1} parent=1 // pred_check
      _
    $region11: #{autoencoder_forward.1} parent=1 // pred_check_branch
      %17 = sbr.rel (0) target = $region13
    $region12: #{autoencoder_forward.1} parent=1 // pred_region
      _
    $region13: #{autoencoder_forward.1} parent=1 // pred_fallthru
      _
    %v18 = vld [vmem:[%s0] sm:$0xff]
    %v19 = vld [vmem:[%s1] sm:$0xff]
    %v20 = vld [vmem:[%s1 + $0x8] sm:$0xff]
    %v21 = vld [vmem:[%s1 + $0x10] sm:$0xff]
    %v22 = vld [vmem:[%s1 + $0x18] sm:$0xff]
    %v23 = vld [vmem:[%s1 + $0x20] sm:$0xff]
    %v24 = vld [vmem:[%s1 + $0x28] sm:$0xff]
    %v25 = vld [vmem:[%s1 + $0x30] sm:$0xff]
    %v26 = vld [vmem:[%s1 + $0x38] sm:$0xff]
    %v27 = vld [vmem:[%s1 + $0x40] sm:$0xff]
    %v28 = vld [vmem:[%s1 + $0x48] sm:$0xff]
    %v29 = vld [vmem:[%s1 + $0x50] sm:$0xff]
    %v30 = vld [vmem:[%s1 + $0x58] sm:$0xff]
    %v31 = vld [vmem:[%s1 + $0x60] sm:$0xff]
    %v32 = vld [vmem:[%s1 + $0x68] sm:$0xff]
    %v33 = vld [vmem:[%s1 + $0x70] sm:$0xff]
    %v34 = vld [vmem:[%s1 + $0x78] sm:$0xff]
    %v35 = vld [vmem:[%s2] sm:$0x1]
    %v37 = vlaneseq
    %v38 = vshrl.u32 %v37, 7
    %v39 = vsub.s32 0, %v38
    %v40 = vrot.slane %v35, %v39
    %42 = vmatprep.subr.mxu0 0.0
    %43 = vmatpush1.msra.mxu0 %v19
    %44 = vmatprep.subr.mxu0 0.0
    %45 = vmatpush1.msra.mxu0 %v20
    %46 = vmatprep.subr.mxu0 0.0
    %47 = vmatpush1.msra.mxu0 %v21
    %48 = vmatprep.subr.mxu0 0.0
    %49 = vmatpush1.msra.mxu0 %v22
    %50 = vmatprep.subr.mxu0 0.0
    %51 = vmatpush1.msra.mxu0 %v23
    %52 = vmatprep.subr.mxu0 0.0
    %53 = vmatpush1.msra.mxu0 %v24
    %54 = vmatprep.subr.mxu0 0.0
    %55 = vmatpush1.msra.mxu0 %v25
    %56 = vmatprep.subr.mxu0 0.0
    %57 = vmatpush1.msra.mxu0 %v26
    %58 = vmatprep.subr.mxu0 0.0
    %59 = vmatpush1.msra.mxu0 %v27
    %60 = vmatprep.subr.mxu0 0.0
    %61 = vmatpush1.msra.mxu0 %v28
    %62 = vmatprep.subr.mxu0 0.0
    %63 = vmatpush1.msra.mxu0 %v29
    %64 = vmatprep.subr.mxu0 0.0
    %65 = vmatpush1.msra.mxu0 %v30
    %66 = vmatprep.subr.mxu0 0.0
    %67 = vmatpush1.msra.mxu0 %v31
    %68 = vmatprep.subr.mxu0 0.0
    %69 = vmatpush1.msra.mxu0 %v32
    %70 = vmatprep.subr.mxu0 0.0
    %71 = vmatpush1.msra.mxu0 %v33
    %72 = vmatprep.subr.mxu0 0.0
    %73 = vmatpush1.msra.mxu0 %v34
    %74 = vmatprep.subr.mxu0 0.0
    %75 = vmatpush1.msra.mxu0 0.0
    %76 = vmatprep.subr.mxu0 0.0
    %77 = vmatpush1.msra.mxu0 0.0
    %78 = vmatprep.subr.mxu0 0.0
    %79 = vmatpush1.msra.mxu0 0.0
    %80 = vmatprep.subr.mxu0 0.0
    %81 = vmatpush1.msra.mxu0 0.0
    %82 = vmatprep.subr.mxu0 0.0
    %83 = vmatpush1.msra.mxu0 0.0
    %84 = vmatprep.subr.mxu0 0.0
    %85 = vmatpush1.msra.mxu0 0.0
    %86 = vmatprep.subr.mxu0 0.0
    %87 = vmatpush1.msra.mxu0 0.0
    %88 = vmatprep.subr.mxu0 0.0
    %89 = vmatpush1.msra.mxu0 0.0
    %90 = vmatprep.subr.mxu0 0.0
    %91 = vmatpush1.msra.mxu0 0.0
    %92 = vmatprep.subr.mxu0 0.0
    %93 = vmatpush1.msra.mxu0 0.0
    %94 = vmatprep.subr.mxu0 0.0
    %95 = vmatpush1.msra.mxu0 0.0
    %96 = vmatprep.subr.mxu0 0.0
    %97 = vmatpush1.msra.mxu0 0.0
    %98 = vmatprep.subr.mxu0 0.0
    %99 = vmatpush1.msra.mxu0 0.0
    %100 = vmatprep.subr.mxu0 0.0
    %101 = vmatpush1.msra.mxu0 0.0
    %102 = vmatprep.subr.mxu0 0.0
    %103 = vmatpush1.msra.mxu0 0.0
    %104 = vmatprep.subr.mxu0 0.0
    %105 = vmatpush1.msra.mxu0 0.0
    %106 = vmatprep.mubr.f32.mxu0 0.0
    %107 = vmatmul.mubr.f32.gmra.mrb[0].mxu0 %v18
    %v108 = vpop.f32.mrb[0].mxu0
    %v109 = vadd.f32 %v40, %v108
    %v110 = vpop.f32.mrb[0].mxu0
    %111 = vdwg.mxu0
    %v112 = vtanh.pop %v109
    %s113 = scalar_lea.vmem %s1, 128
    %v114 = vld [vmem:[%s113] sm:$0xff]
    %v115 = vld [vmem:[%s113 + $0x8] sm:$0xff]
    %v116 = vld [vmem:[%s113 + $0x10] sm:$0xff]
    %v117 = vld [vmem:[%s113 + $0x18] sm:$0xff]
    %v118 = vld [vmem:[%s113 + $0x20] sm:$0xff]
    %v119 = vld [vmem:[%s113 + $0x28] sm:$0xff]
    %v120 = vld [vmem:[%s113 + $0x30] sm:$0xff]
    %v121 = vld [vmem:[%s113 + $0x38] sm:$0xff]
    %v122 = vld [vmem:[%s113 + $0x40] sm:$0xff]
    %v123 = vld [vmem:[%s113 + $0x48] sm:$0xff]
    %v124 = vld [vmem:[%s113 + $0x50] sm:$0xff]
    %v125 = vld [vmem:[%s113 + $0x58] sm:$0xff]
    %v126 = vld [vmem:[%s113 + $0x60] sm:$0xff]
    %v127 = vld [vmem:[%s113 + $0x68] sm:$0xff]
    %v128 = vld [vmem:[%s113 + $0x70] sm:$0xff]
    %v129 = vld [vmem:[%s113 + $0x78] sm:$0xff]
    %s130 = scalar_lea.vmem %s2, 1
    %v131 = vld [vmem:[%s130] sm:$0x1]
    %v133 = vlaneseq
    %v134 = vshrl.u32 %v133, 7
    %v135 = vsub.s32 0, %v134
    %v136 = vrot.slane %v131, %v135
    %138 = vmatprep.subr.mxu0 0.0
    %139 = vmatpush1.msra.mxu0 %v114
    %140 = vmatprep.subr.mxu0 0.0
    %141 = vmatpush1.msra.mxu0 %v115
    %142 = vmatprep.subr.mxu0 0.0
    %143 = vmatpush1.msra.mxu0 %v116
    %144 = vmatprep.subr.mxu0 0.0
    %145 = vmatpush1.msra.mxu0 %v117
    %146 = vmatprep.subr.mxu0 0.0
    %147 = vmatpush1.msra.mxu0 %v118
    %148 = vmatprep.subr.mxu0 0.0
    %149 = vmatpush1.msra.mxu0 %v119
    %150 = vmatprep.subr.mxu0 0.0
    %151 = vmatpush1.msra.mxu0 %v120
    %152 = vmatprep.subr.mxu0 0.0
    %153 = vmatpush1.msra.mxu0 %v121
    %154 = vmatprep.subr.mxu0 0.0
    %155 = vmatpush1.msra.mxu0 %v122
    %156 = vmatprep.subr.mxu0 0.0
    %157 = vmatpush1.msra.mxu0 %v123
    %158 = vmatprep.subr.mxu0 0.0
    %159 = vmatpush1.msra.mxu0 %v124
    %160 = vmatprep.subr.mxu0 0.0
    %161 = vmatpush1.msra.mxu0 %v125
    %162 = vmatprep.subr.mxu0 0.0
    %163 = vmatpush1.msra.mxu0 %v126
    %164 = vmatprep.subr.mxu0 0.0
    %165 = vmatpush1.msra.mxu0 %v127
    %166 = vmatprep.subr.mxu0 0.0
    %167 = vmatpush1.msra.mxu0 %v128
    %168 = vmatprep.subr.mxu0 0.0
    %169 = vmatpush1.msra.mxu0 %v129
    %170 = vmatprep.subr.mxu0 0.0
    %171 = vmatpush1.msra.mxu0 0.0
    %172 = vmatprep.subr.mxu0 0.0
    %173 = vmatpush1.msra.mxu0 0.0
    %174 = vmatprep.subr.mxu0 0.0
    %175 = vmatpush1.msra.mxu0 0.0
    %176 = vmatprep.subr.mxu0 0.0
    %177 = vmatpush1.msra.mxu0 0.0
    %178 = vmatprep.subr.mxu0 0.0
    %179 = vmatpush1.msra.mxu0 0.0
    %180 = vmatprep.subr.mxu0 0.0
    %181 = vmatpush1.msra.mxu0 0.0
    %182 = vmatprep.subr.mxu0 0.0
    %183 = vmatpush1.msra.mxu0 0.0
    %184 = vmatprep.subr.mxu0 0.0
    %185 = vmatpush1.msra.mxu0 0.0
    %186 = vmatprep.subr.mxu0 0.0
    %187 = vmatpush1.msra.mxu0 0.0
    %188 = vmatprep.subr.mxu0 0.0
    %189 = vmatpush1.msra.mxu0 0.0
    %190 = vmatprep.subr.mxu0 0.0
    %191 = vmatpush1.msra.mxu0 0.0
    %192 = vmatprep.subr.mxu0 0.0
    %193 = vmatpush1.msra.mxu0 0.0
    %194 = vmatprep.subr.mxu0 0.0
    %195 = vmatpush1.msra.mxu0 0.0
    %196 = vmatprep.subr.mxu0 0.0
    %197 = vmatpush1.msra.mxu0 0.0
    %198 = vmatprep.subr.mxu0 0.0
    %199 = vmatpush1.msra.mxu0 0.0
    %200 = vmatprep.subr.mxu0 0.0
    %201 = vmatpush1.msra.mxu0 0.0
    %202 = vmatprep.mubr.f32.mxu0 0.0
    %203 = vmatmul.mubr.f32.gmra.mrb[0].mxu0 %v112
    %v204 = vpop.f32.mrb[0].mxu0
    %v205 = vadd.f32 %v136, %v204
    %v206 = vpop.f32.mrb[0].mxu0
    %207 = vdwg.mxu0
    %v208 = vtanh.pop %v205
    %209 = vst [vmem:[#allocation2] sm:$0xff] %v208
    %s210 = scalar_lea.vmem %s1, 256
    %v211 = vld [vmem:[%s210] sm:$0xff]
    %v212 = vld [vmem:[%s210 + $0x8] sm:$0xff]
    %v213 = vld [vmem:[%s210 + $0x10] sm:$0xff]
    %v214 = vld [vmem:[%s210 + $0x18] sm:$0xff]
    %v215 = vld [vmem:[%s210 + $0x20] sm:$0xff]
    %v216 = vld [vmem:[%s210 + $0x28] sm:$0xff]
    %v217 = vld [vmem:[%s210 + $0x30] sm:$0xff]
    %v218 = vld [vmem:[%s210 + $0x38] sm:$0xff]
    %v219 = vld [vmem:[%s210 + $0x40] sm:$0xff]
    %v220 = vld [vmem:[%s210 + $0x48] sm:$0xff]
    %v221 = vld [vmem:[%s210 + $0x50] sm:$0xff]
    %v222 = vld [vmem:[%s210 + $0x58] sm:$0xff]
    %v223 = vld [vmem:[%s210 + $0x60] sm:$0xff]
    %v224 = vld [vmem:[%s210 + $0x68] sm:$0xff]
    %v225 = vld [vmem:[%s210 + $0x70] sm:$0xff]
    %v226 = vld [vmem:[%s210 + $0x78] sm:$0xff]
    %s227 = scalar_lea.vmem %s2, 2
    %v228 = vld [vmem:[%s227] sm:$0x1]
    %v230 = vlaneseq
    %v231 = vshrl.u32 %v230, 7
    %v232 = vsub.s32 0, %v231
    %v233 = vrot.slane %v228, %v232
    %235 = vmatprep.subr.mxu0 0.0
    %236 = vmatpush1.msra.mxu0 %v211
    %237 = vmatprep.subr.mxu0 0.0
    %238 = vmatpush1.msra.mxu0 %v212
    %239 = vmatprep.subr.mxu0 0.0
    %240 = vmatpush1.msra.mxu0 %v213
    %241 = vmatprep.subr.mxu0 0.0
    %242 = vmatpush1.msra.mxu0 %v214
    %243 = vmatprep.subr.mxu0 0.0
    %244 = vmatpush1.msra.mxu0 %v215
    %245 = vmatprep.subr.mxu0 0.0
    %246 = vmatpush1.msra.mxu0 %v216
    %247 = vmatprep.subr.mxu0 0.0
    %248 = vmatpush1.msra.mxu0 %v217
    %249 = vmatprep.subr.mxu0 0.0
    %250 = vmatpush1.msra.mxu0 %v218
    %251 = vmatprep.subr.mxu0 0.0
    %252 = vmatpush1.msra.mxu0 %v219
    %253 = vmatprep.subr.mxu0 0.0
    %254 = vmatpush1.msra.mxu0 %v220
    %255 = vmatprep.subr.mxu0 0.0
    %256 = vmatpush1.msra.mxu0 %v221
    %257 = vmatprep.subr.mxu0 0.0
    %258 = vmatpush1.msra.mxu0 %v222
    %259 = vmatprep.subr.mxu0 0.0
    %260 = vmatpush1.msra.mxu0 %v223
    %261 = vmatprep.subr.mxu0 0.0
    %262 = vmatpush1.msra.mxu0 %v224
    %263 = vmatprep.subr.mxu0 0.0
    %264 = vmatpush1.msra.mxu0 %v225
    %265 = vmatprep.subr.mxu0 0.0
    %266 = vmatpush1.msra.mxu0 %v226
    %267 = vmatprep.subr.mxu0 0.0
    %268 = vmatpush1.msra.mxu0 0.0
    %269 = vmatprep.subr.mxu0 0.0
    %270 = vmatpush1.msra.mxu0 0.0
    %271 = vmatprep.subr.mxu0 0.0
    %272 = vmatpush1.msra.mxu0 0.0
    %273 = vmatprep.subr.mxu0 0.0
    %274 = vmatpush1.msra.mxu0 0.0
    %275 = vmatprep.subr.mxu0 0.0
    %276 = vmatpush1.msra.mxu0 0.0
    %277 = vmatprep.subr.mxu0 0.0
    %278 = vmatpush1.msra.mxu0 0.0
    %279 = vmatprep.subr.mxu0 0.0
    %280 = vmatpush1.msra.mxu0 0.0
    %281 = vmatprep.subr.mxu0 0.0
    %282 = vmatpush1.msra.mxu0 0.0
    %283 = vmatprep.subr.mxu0 0.0
    %284 = vmatpush1.msra.mxu0 0.0
    %285 = vmatprep.subr.mxu0 0.0
    %286 = vmatpush1.msra.mxu0 0.0
    %287 = vmatprep.subr.mxu0 0.0
    %288 = vmatpush1.msra.mxu0 0.0
    %289 = vmatprep.subr.mxu0 0.0
    %290 = vmatpush1.msra.mxu0 0.0
    %291 = vmatprep.subr.mxu0 0.0
    %292 = vmatpush1.msra.mxu0 0.0
    %293 = vmatprep.subr.mxu0 0.0
    %294 = vmatpush1.msra.mxu0 0.0
    %295 = vmatprep.subr.mxu0 0.0
    %296 = vmatpush1.msra.mxu0 0.0
    %297 = vmatprep.subr.mxu0 0.0
    %298 = vmatpush1.msra.mxu0 0.0
    %299 = vmatprep.mubr.f32.mxu0 0.0
    %300 = vmatmul.mubr.f32.gmra.mrb[0].mxu0 %v208
    %v301 = vpop.f32.mrb[0].mxu0
    %v302 = vadd.f32 %v233, %v301
    %v303 = vpop.f32.mrb[0].mxu0
    %304 = vdwg.mxu0
    %v305 = vtanh.pop %v302
    %s306 = scalar_lea.vmem %s1, 384
    %v307 = vld [vmem:[%s306] sm:$0xff]
    %v308 = vld [vmem:[%s306 + $0x8] sm:$0xff]
    %v309 = vld [vmem:[%s306 + $0x10] sm:$0xff]
    %v310 = vld [vmem:[%s306 + $0x18] sm:$0xff]
    %v311 = vld [vmem:[%s306 + $0x20] sm:$0xff]
    %v312 = vld [vmem:[%s306 + $0x28] sm:$0xff]
    %v313 = vld [vmem:[%s306 + $0x30] sm:$0xff]
    %v314 = vld [vmem:[%s306 + $0x38] sm:$0xff]
    %v315 = vld [vmem:[%s306 + $0x40] sm:$0xff]
    %v316 = vld [vmem:[%s306 + $0x48] sm:$0xff]
    %v317 = vld [vmem:[%s306 + $0x50] sm:$0xff]
    %v318 = vld [vmem:[%s306 + $0x58] sm:$0xff]
    %v319 = vld [vmem:[%s306 + $0x60] sm:$0xff]
    %v320 = vld [vmem:[%s306 + $0x68] sm:$0xff]
    %v321 = vld [vmem:[%s306 + $0x70] sm:$0xff]
    %v322 = vld [vmem:[%s306 + $0x78] sm:$0xff]
    %s323 = scalar_lea.vmem %s2, 3
    %v324 = vld [vmem:[%s323] sm:$0x1]
    %v326 = vlaneseq
    %v327 = vshrl.u32 %v326, 7
    %v328 = vsub.s32 0, %v327
    %v329 = vrot.slane %v324, %v328
    %331 = vmatprep.subr.mxu0 0.0
    %332 = vmatpush1.msra.mxu0 %v307
    %333 = vmatprep.subr.mxu0 0.0
    %334 = vmatpush1.msra.mxu0 %v308
    %335 = vmatprep.subr.mxu0 0.0
    %336 = vmatpush1.msra.mxu0 %v309
    %337 = vmatprep.subr.mxu0 0.0
    %338 = vmatpush1.msra.mxu0 %v310
    %339 = vmatprep.subr.mxu0 0.0
    %340 = vmatpush1.msra.mxu0 %v311
    %341 = vmatprep.subr.mxu0 0.0
    %342 = vmatpush1.msra.mxu0 %v312
    %343 = vmatprep.subr.mxu0 0.0
    %344 = vmatpush1.msra.mxu0 %v313
    %345 = vmatprep.subr.mxu0 0.0
    %346 = vmatpush1.msra.mxu0 %v314
    %347 = vmatprep.subr.mxu0 0.0
    %348 = vmatpush1.msra.mxu0 %v315
    %349 = vmatprep.subr.mxu0 0.0
    %350 = vmatpush1.msra.mxu0 %v316
    %351 = vmatprep.subr.mxu0 0.0
    %352 = vmatpush1.msra.mxu0 %v317
    %353 = vmatprep.subr.mxu0 0.0
    %354 = vmatpush1.msra.mxu0 %v318
    %355 = vmatprep.subr.mxu0 0.0
    %356 = vmatpush1.msra.mxu0 %v319
    %357 = vmatprep.subr.mxu0 0.0
    %358 = vmatpush1.msra.mxu0 %v320
    %359 = vmatprep.subr.mxu0 0.0
    %360 = vmatpush1.msra.mxu0 %v321
    %361 = vmatprep.subr.mxu0 0.0
    %362 = vmatpush1.msra.mxu0 %v322
    %363 = vmatprep.subr.mxu0 0.0
    %364 = vmatpush1.msra.mxu0 0.0
    %365 = vmatprep.subr.mxu0 0.0
    %366 = vmatpush1.msra.mxu0 0.0
    %367 = vmatprep.subr.mxu0 0.0
    %368 = vmatpush1.msra.mxu0 0.0
    %369 = vmatprep.subr.mxu0 0.0
    %370 = vmatpush1.msra.mxu0 0.0
    %371 = vmatprep.subr.mxu0 0.0
    %372 = vmatpush1.msra.mxu0 0.0
    %373 = vmatprep.subr.mxu0 0.0
    %374 = vmatpush1.msra.mxu0 0.0
    %375 = vmatprep.subr.mxu0 0.0
    %376 = vmatpush1.msra.mxu0 0.0
    %377 = vmatprep.subr.mxu0 0.0
    %378 = vmatpush1.msra.mxu0 0.0
    %379 = vmatprep.subr.mxu0 0.0
    %380 = vmatpush1.msra.mxu0 0.0
    %381 = vmatprep.subr.mxu0 0.0
    %382 = vmatpush1.msra.mxu0 0.0
    %383 = vmatprep.subr.mxu0 0.0
    %384 = vmatpush1.msra.mxu0 0.0
    %385 = vmatprep.subr.mxu0 0.0
    %386 = vmatpush1.msra.mxu0 0.0
    %387 = vmatprep.subr.mxu0 0.0
    %388 = vmatpush1.msra.mxu0 0.0
    %389 = vmatprep.subr.mxu0 0.0
    %390 = vmatpush1.msra.mxu0 0.0
    %391 = vmatprep.subr.mxu0 0.0
    %392 = vmatpush1.msra.mxu0 0.0
    %393 = vmatprep.subr.mxu0 0.0
    %394 = vmatpush1.msra.mxu0 0.0
    %395 = vmatprep.mubr.f32.mxu0 0.0
    %396 = vmatmul.mubr.f32.gmra.mrb[0].mxu0 %v305
    %v397 = vpop.f32.mrb[0].mxu0
    %v398 = vadd.f32 %v329, %v397
    %v399 = vpop.f32.mrb[0].mxu0
    %400 = vdwg.mxu0
    %v401 = vtanh.pop %v398
    %402 = vst [vmem:[#allocation4] sm:$0xff] %v401
    // Predicated region
    $region14: #{autoencoder_forward.1} parent=1 // pred_check
      _
    $region15: #{autoencoder_forward.1} parent=1 // pred_check_branch
      %404 = sbr.rel (0) target = $region17
    $region16: #{autoencoder_forward.1} parent=1 // pred_region
      %s406 = ssub.s32 128, 128
      %407 = vsyncadd [#allocation3], %s406
      %s409 = sshll.u32 [#allocation2], 4
      %s410 = int_to_ptr.vmem [resolvable:$true] %s409
      %412 = dma.vmem_to_hbm [thread:$0]  %s410, 128, %s3, [#allocation3]
    $region17: #{autoencoder_forward.1} parent=1 // pred_fallthru
      _
    // Predicated region
    $region18: #{autoencoder_forward.1} parent=1 // pred_check
      _
    $region19: #{autoencoder_forward.1} parent=1 // pred_check_branch
      %414 = sbr.rel (0) target = $region21
    $region20: #{autoencoder_forward.1} parent=1 // pred_region
      %s416 = ssub.s32 128, 128
      %417 = vsyncadd [#allocation5], %s416
      %s419 = sshll.u32 [#allocation4], 4
      %s420 = int_to_ptr.vmem [resolvable:$true] %s419
      %422 = dma.vmem_to_hbm [thread:$0]  %s420, 128, %s4, [#allocation5]
    $region21: #{autoencoder_forward.1} parent=1 // pred_fallthru
      _
    // Predicated region
    $region22: #{autoencoder_forward.1} parent=1 // pred_check
      _
    $region23: #{autoencoder_forward.1} parent=1 // pred_check_branch
      %424 = sbr.rel (0) target = $region25
    $region24: #{autoencoder_forward.1} parent=1 // pred_region
      %425 = dma.done [#allocation3], 128
    $region25: #{autoencoder_forward.1} parent=1 // pred_fallthru
      _
    // Predicated region
    $region26: #{autoencoder_forward.1} parent=1 // pred_check
      _
    $region27: #{autoencoder_forward.1} parent=1 // pred_check_branch
      %427 = sbr.rel (0) target = $region29
    $region28: #{autoencoder_forward.1} parent=1 // pred_region
      %428 = dma.done [#allocation5], 128
    $region29: #{autoencoder_forward.1} parent=1 // pred_fallthru
      _
    %429 = vsyncpa [#allocation3], 1
    %430 = vsyncpa [#allocation5], 1

</llo_original>
